<compile_context>
chip_gen: v6e
topology: v6e:2x2x1
jax: 0.10.0
libtpu: 0.0.40
codegen_flags: <defaults>
</compile_context>

<pallas_src>
import functools

import jax
import jax.numpy as jnp
from jax.experimental import pallas as pl
from jax.experimental.pallas import tpu as pltpu


def _ce_label_smooth_kernel(labels_ref, pred_ref, loss_ref, *, epsilon, num_classes):
    # pred: (TB, C) logits (source dtype); labels: (TB, 1) int32.
    pred = pred_ref[...].astype(jnp.float32)

    # Numerically stable log-softmax pieces.
    m = jnp.max(pred, axis=1, keepdims=True)                      # (TB, 1)
    shifted = pred - m                                            # (TB, C)
    sum_exp = jnp.sum(jnp.exp(shifted), axis=1, keepdims=True)    # (TB, 1)
    lse = jnp.log(sum_exp)                                        # (TB, 1)
    sum_shifted = jnp.sum(shifted, axis=1, keepdims=True)         # (TB, 1)

    # Gather the label logit via a masked reduction (no one-hot tensor built).
    classes = jax.lax.broadcasted_iota(jnp.int32, pred.shape, 1)  # (TB, C)
    gathered = jnp.sum(
        jnp.where(classes == labels_ref[...], shifted, 0.0),
        axis=1, keepdims=True)                                    # (TB, 1)

    # Fused smoothed cross entropy:
    #   log_prob[label]      = gathered - lse
    #   sum_c log_prob[., c] = sum(shifted) - C * lse
    gathered_logprob = gathered - lse
    sum_logprobs = sum_shifted - float(num_classes) * lse
    loss_ref[...] = -((1.0 - epsilon) * gathered_logprob
                      + (epsilon / num_classes) * sum_logprobs)


def cross_entropy_label_smooth(pred, labels, *, epsilon=0.1, reduction=True):
    """Pallas port of CrossEntropyLabelSmooth.forward (mix=None path).

    pred:   (B, C) float logits (f32 or bf16; kept in source dtype through HBM)
    labels: (B,)   integer class ids
    """
    B, C = pred.shape
    itemsize = jnp.dtype(pred.dtype).itemsize

    # Batch tile: largest multiple of 8 rows such that a double-buffered
    # (TB, C) tile stays comfortably inside the default scoped VMEM on
    # v5e (16 MiB) / v6e (32 MiB) / v7x (32 MiB scoped, 64 MiB physical).
    target_bytes_per_buf = 6 * 1024 * 1024
    tb = min(512, max(8, target_bytes_per_buf // max(1, C * itemsize)))
    tb = max(8, (tb // 8) * 8)
    b_pad8 = ((B + 7) // 8) * 8
    tb = min(tb, b_pad8)

    bp = pl.cdiv(B, tb) * tb
    pred_p = pred if bp == B else jnp.pad(pred, ((0, bp - B), (0, 0)))
    labels_i32 = labels.astype(jnp.int32)
    if bp != B:
        labels_i32 = jnp.pad(labels_i32, (0, bp - B))
    labels2d = labels_i32.reshape(bp, 1)

    kernel = functools.partial(
        _ce_label_smooth_kernel, epsilon=float(epsilon), num_classes=C)

    per_sample = pl.pallas_call(
        kernel,
        out_shape=jax.ShapeDtypeStruct((bp, 1), jnp.float32),
        grid=(bp // tb,),
        in_specs=[
            pl.BlockSpec((tb, 1), lambda i: (i, 0)),   # labels tile
            pl.BlockSpec((tb, C), lambda i: (i, 0)),   # logits tile
        ],
        out_specs=pl.BlockSpec((tb, 1), lambda i: (i, 0)),
        compiler_params=pltpu.CompilerParams(
            dimension_semantics=("parallel",)),
        cost_estimate=pl.CostEstimate(
            flops=6 * bp * C,
            transcendentals=bp * C,
            bytes_accessed=bp * C * itemsize + 2 * bp * 4),
    )(labels2d, pred_p)

    per_sample = per_sample[:B, 0]
    if reduction:
        return jnp.mean(per_sample)
    return per_sample

    # TODO(synk): the optional `mix` branch (convex combo of two smoothed
    # one-hot targets) is not exercised here; it would only blend two masked
    # gathers inside the same kernel.


def _reference(pred, labels, epsilon=0.1, reduction=True):
    B, C = pred.shape
    log_probs = jax.nn.log_softmax(pred.astype(jnp.float32), axis=1)
    onehot = jax.nn.one_hot(labels, C, dtype=jnp.float32)
    truth = (1.0 - epsilon) * onehot + epsilon / C
    loss = -(truth * log_probs).sum(axis=1)
    return loss.mean() if reduction else loss


if __name__ == "__main__":
    key = jax.random.PRNGKey(0)
    k_pred, k_lab = jax.random.split(key)

    batch, num_classes = 8, 32
    pred = jax.random.normal(k_pred, (batch, num_classes), dtype=jnp.float32)
    labels = jax.random.randint(k_lab, (batch,), 0, num_classes, dtype=jnp.int32)

    # reduction=True (mean) path
    loss = cross_entropy_label_smooth(pred, labels, epsilon=0.1, reduction=True)
    loss = jax.block_until_ready(loss)
    ref = _reference(pred, labels, epsilon=0.1, reduction=True)
    assert jnp.allclose(loss, ref, atol=1e-5, rtol=1e-5), (loss, ref)

    # reduction=False (per-sample) path
    per = cross_entropy_label_smooth(pred, labels, epsilon=0.1, reduction=False)
    per = jax.block_until_ready(per)
    ref_per = _reference(pred, labels, epsilon=0.1, reduction=False)
    assert jnp.allclose(per, ref_per, atol=1e-5, rtol=1e-5), (per, ref_per)

    print("KERNEL_OK")
</pallas_src>

<mosaic_0001>
module attributes {stable_mosaic.version = 11 : i64} {
  func.func @_ce_label_smooth_kernel(%arg0: i32, %arg1: memref<8x1xi32, #tpu.memory_space<vmem>>, %arg2: memref<8x32xf32, #tpu.memory_space<vmem>>, %arg3: memref<8x1xf32, #tpu.memory_space<vmem>>) attributes {dimension_semantics = [#tpu.dimension_semantics<parallel>], iteration_bounds = array<i64: 1>, scalar_prefetch = 0 : i64, scratch_operands = 0 : i64, tpu.core_type = #tpu.core_type<tc>, window_params = [{transform_indices = @transform_0, window_bounds = array<i64: 8, 1>}, {transform_indices = @transform_1, window_bounds = array<i64: 8, 32>}, {transform_indices = @transform_2, window_bounds = array<i64: 8, 1>}]} {
    %c0 = arith.constant 0 : index
    %c0_0 = arith.constant 0 : index
    %0 = vector.load %arg2[%c0, %c0_0] : memref<8x32xf32, #tpu.memory_space<vmem>>, vector<8x32xf32>
    %cst = arith.constant dense<0xFF800000> : vector<8xf32>
    %1 = vector.multi_reduction <maximumf>, %0, %cst [1] : vector<8x32xf32> to vector<8xf32>
    %2 = vector.shape_cast %1 : vector<8xf32> to vector<8x1xf32>
    %3 = vector.broadcast %2 : vector<8x1xf32> to vector<8x32xf32>
    %4 = arith.subf %0, %3 : vector<8x32xf32>
    %5 = math.exp %4 : vector<8x32xf32>
    %cst_1 = arith.constant dense<0.000000e+00> : vector<8xf32>
    %6 = vector.multi_reduction <add>, %5, %cst_1 [1] : vector<8x32xf32> to vector<8xf32>
    %7 = vector.shape_cast %6 : vector<8xf32> to vector<8x1xf32>
    %8 = math.log %7 : vector<8x1xf32>
    %cst_2 = arith.constant dense<0.000000e+00> : vector<8xf32>
    %9 = vector.multi_reduction <add>, %4, %cst_2 [1] : vector<8x32xf32> to vector<8xf32>
    %10 = vector.shape_cast %9 : vector<8xf32> to vector<8x1xf32>
    %11 = tpu.iota {dimensions = array<i32: 1>} : vector<8x32xi32>
    %c0_3 = arith.constant 0 : index
    %c0_4 = arith.constant 0 : index
    %12 = vector.load %arg1[%c0_3, %c0_4] : memref<8x1xi32, #tpu.memory_space<vmem>>, vector<8x1xi32>
    %13 = vector.broadcast %12 : vector<8x1xi32> to vector<8x32xi32>
    %14 = arith.cmpi eq, %11, %13 : vector<8x32xi32>
    %cst_5 = arith.constant 0.000000e+00 : f32
    %15 = vector.broadcast %cst_5 : f32 to vector<8x32xf32>
    %16 = arith.select %14, %4, %15 : vector<8x32xi1>, vector<8x32xf32>
    %cst_6 = arith.constant dense<0.000000e+00> : vector<8xf32>
    %17 = vector.multi_reduction <add>, %16, %cst_6 [1] : vector<8x32xf32> to vector<8xf32>
    %18 = vector.shape_cast %17 : vector<8xf32> to vector<8x1xf32>
    %19 = arith.subf %18, %8 : vector<8x1xf32>
    %cst_7 = arith.constant 3.200000e+01 : f32
    %20 = vector.broadcast %cst_7 : f32 to vector<8x1xf32>
    %21 = arith.mulf %20, %8 : vector<8x1xf32>
    %22 = arith.subf %10, %21 : vector<8x1xf32>
    %cst_8 = arith.constant 0.899999976 : f32
    %23 = vector.broadcast %cst_8 : f32 to vector<8x1xf32>
    %24 = arith.mulf %23, %19 : vector<8x1xf32>
    %cst_9 = arith.constant 3.125000e-03 : f32
    %25 = vector.broadcast %cst_9 : f32 to vector<8x1xf32>
    %26 = arith.mulf %25, %22 : vector<8x1xf32>
    %27 = arith.addf %24, %26 : vector<8x1xf32>
    %cst_10 = arith.constant 0.000000e+00 : f32
    %28 = vector.broadcast %cst_10 : f32 to vector<8x1xf32>
    %29 = arith.subf %28, %27 : vector<8x1xf32>
    %c0_11 = arith.constant 0 : index
    %c0_12 = arith.constant 0 : index
    %30 = vector.load %arg3[%c0_11, %c0_12] : memref<8x1xf32, #tpu.memory_space<vmem>>, vector<8x1xf32>
    tpu.vector_store %arg3[%c0_11, %c0_12], %29 {strides = array<i32>} : memref<8x1xf32, #tpu.memory_space<vmem>>, vector<8x1xf32>,
    return
  }
  func.func @transform_0(%arg0: i32) -> (i32, i32) {
    %c0_i32 = arith.constant 0 : i32
    %c0_i32_0 = arith.constant 0 : i32
    return %arg0, %c0_i32 : i32, i32
  }
  func.func @transform_1(%arg0: i32) -> (i32, i32) {
    %c0_i32 = arith.constant 0 : i32
    %c0_i32_0 = arith.constant 0 : i32
    return %arg0, %c0_i32 : i32, i32
  }
  func.func @transform_2(%arg0: i32) -> (i32, i32) {
    %c0_i32 = arith.constant 0 : i32
    %c0_i32_0 = arith.constant 0 : i32
    return %arg0, %c0_i32 : i32, i32
  }
}

</mosaic_0001>

<llo_original>
// kernel: tpu_custom_call.1
$region0: #{tpu_custom_call.1}
  #allocation0 [shape = 'u32[]', space=smem, size = 0x4, offset = 0x4, fixed_abs, tag = 'smem constant byte address 0x4 - core index']
  #allocation1 [shape = 'u32[144,128]{1,0:T(1,128)}', space=vmem, size = 0x12000, scoped, tag = 'internal scratch']
  %s0 = inlined_call_operand.vmem [shape: s32[8,1], index: 0, kind: input, shape index: {}]
  %s1 = inlined_call_operand.vmem [shape: f32[8,32], index: 1, kind: input, shape index: {}]
  %s2 = inlined_call_operand.vmem [shape: f32[8,1], index: 2, kind: output, shape index: {}]
  %s3 = sld [smem:[#allocation0]]
  $region18: #{tpu_custom_call.1} parent=0
    _
  %s5 = ssub.s32 1, %s3
  %s6 = scalar_select 0, %s5, %s3
  // Predicated region
  $region2: #{tpu_custom_call.1} parent=0 // pred_check
    _
  $region3: #{tpu_custom_call.1} parent=0 // pred_check_branch
    %8 = sbr.rel (0) target = $region5
  $region4: #{tpu_custom_call.1} parent=0 // pred_region
    _
  $region5: #{tpu_custom_call.1} parent=0 // pred_fallthru
    _
  // Predicated region
  $region6: #{tpu_custom_call.1} parent=0 // pred_check
    _
  $region7: #{tpu_custom_call.1} parent=0 // pred_check_branch
    %10 = sbr.rel (0) target = $region9
  $region8: #{tpu_custom_call.1} parent=0 // pred_region
    _
  $region9: #{tpu_custom_call.1} parent=0 // pred_fallthru
    _
  %v11 = vld [vmem:[%s1] sm:$0xff]
  %vm12 = vcmask 261120
  %v13 = vsel %vm12, %v11, -inf
  %14 = vmax.xlane.f32.xlu0 %v13
  %v15 = vpop.xlane.xlu0 %14
  %v16 = vsub.f32 %v11, %v15
  %v17 = vmul.f32 %v16, 1.442695
  %v18 = vpow.pop %v17
  %v19 = vsel %vm12, %v18, 0.0
  %20 = vadd.xlane.f32.xlu0 %v19
  %v21 = vpop.xlane.xlu0 %20
  %v22 = vlog2.pop %v21
  %v23 = vmul.f32 %v22, 0.6931472
  %v24 = vsel %vm12, %v16, 0.0
  %25 = vadd.xlane.f32.xlu0 %v24
  %v26 = vpop.xlane.xlu0 %25
  %v27 = vlaneseq
  %v28 = vand.u32 %v27, 127
  %v29 = vld [vmem:[%s0] sm:$0xff]
  %30 = vset.pattern.permute.xlu0 0
  %31 = vperm.xlu0 %30, %v29
  %v32 = vpop.permute.xlu0 %31
  %vm33 = vcmp.eq.s32.totalorder %v28, %v32
  %v34 = vsel %vm33, %v16, 0.0
  %v35 = vsel %vm12, %v34, 0.0
  %36 = vadd.xlane.f32.xlu0 %v35
  %v37 = vpop.xlane.xlu0 %36
  %v38 = vsub.f32 %v37, %v23
  %v39 = vmul.f32 %v23, 32.0
  %v40 = vsub.f32 %v26, %v39
  %v41 = vmul.f32 %v38, 0.9
  %v42 = vmul.f32 %v40, 0.003125
  %v43 = vadd.f32 %v41, %v42
  %v44 = vsub.f32 0.0, %v43
  %vm45 = vcmask 7168
  %46 = vst.msk [vmem:[%s2] sm:$0xff] %vm45, %v44
  // Predicated region
  $region10: #{tpu_custom_call.1} parent=0 // pred_check
    _
  $region11: #{tpu_custom_call.1} parent=0 // pred_check_branch
    %48 = sbr.rel (0) target = $region13
  $region12: #{tpu_custom_call.1} parent=0 // pred_region
    _
  $region13: #{tpu_custom_call.1} parent=0 // pred_fallthru
    _
  // Predicated region
  $region14: #{tpu_custom_call.1} parent=0 // pred_check
    _
  $region15: #{tpu_custom_call.1} parent=0 // pred_check_branch
    %50 = sbr.rel (0) target = $region17
  $region16: #{tpu_custom_call.1} parent=0 // pred_region
    _
  $region17: #{tpu_custom_call.1} parent=0 // pred_fallthru
    _

</llo_original>
